<compile_context>
chip_gen: v7x
topology: tpu7x:2x2x1
jax: 0.10.0
libtpu: 0.0.40
codegen_flags: <defaults>
</compile_context>

<pallas_src>
import jax
import jax.numpy as jnp
from jax.experimental import pallas as pl
from jax.experimental.pallas import tpu as pltpu


def _round_up(x, m):
    return ((x + m - 1) // m) * m


# ----------------------------------------------------------------------------
# Pallas kernel: fused 3-layer MLP applied to a row tile of o AND of o_neg.
# Weights live in VMEM once (constant index maps); both encoder applications
# share them inside a single grid step.
# ----------------------------------------------------------------------------
def _encoder_cl_kernel(o_ref, on_ref, w1_ref, b1_ref, w2_ref, b2_ref,
                       w3_ref, b3_ref, z_ref, zn_ref):
    def mlp(x_f32):
        # MXU dots run bf16 x bf16 -> f32; bias add / ReLU stay in f32 (VPU),
        # but the surviving intermediate is cast to bf16 immediately (needed
        # for the next dot anyway) to halve vreg/spill pressure.
        h1 = jnp.dot(x_f32.astype(jnp.bfloat16), w1_ref[...],
                     preferred_element_type=jnp.float32) + b1_ref[...]
        h1 = jnp.maximum(h1, 0.0).astype(jnp.bfloat16)
        h2 = jnp.dot(h1, w2_ref[...],
                     preferred_element_type=jnp.float32) + b2_ref[...]
        h2 = jnp.maximum(h2, 0.0).astype(jnp.bfloat16)
        return jnp.dot(h2, w3_ref[...],
                       preferred_element_type=jnp.float32) + b3_ref[...]

    z_ref[...] = mlp(o_ref[...])     # dense (tb, 128) store — no masked lanes
    zn_ref[...] = mlp(on_ref[...])


def _encoder_cl_call(o, o_neg, enc_params, *, tb):
    """o, o_neg: (R, o_dim) f32 with R % tb == 0. Returns two (R, out_pad) f32."""
    w1, b1, w2, b2, w3p, b3p = enc_params
    R, o_dim = o.shape
    h_dim = w1.shape[1]
    out_pad = w3p.shape[1]
    grid = (R // tb,)

    row_spec = pl.BlockSpec((tb, o_dim), lambda i: (i, 0))
    out_spec = pl.BlockSpec((tb, out_pad), lambda i: (i, 0))
    const = lambda shape: pl.BlockSpec(shape, lambda i: (0, 0))

    return pl.pallas_call(
        _encoder_cl_kernel,
        out_shape=(jax.ShapeDtypeStruct((R, out_pad), jnp.float32),
                   jax.ShapeDtypeStruct((R, out_pad), jnp.float32)),
        grid=grid,
        in_specs=[
            row_spec,                    # o tile
            row_spec,                    # o_neg tile
            const((o_dim, h_dim)),       # W1 (bf16)
            const((1, h_dim)),           # b1 (f32)
            const((h_dim, h_dim)),       # W2 (bf16)
            const((1, h_dim)),           # b2 (f32)
            const((h_dim, out_pad)),     # W3 padded to 128 lanes (bf16)
            const((1, out_pad)),         # b3 padded (f32)
        ],
        out_specs=(out_spec, out_spec),
        compiler_params=pltpu.CompilerParams(
            dimension_semantics=("parallel",)),
    )(o, o_neg, w1, b1, w2, b2, w3p, b3p)


# ----------------------------------------------------------------------------
# Parameter initialization (PyTorch-Linear-style uniform bounds)
# ----------------------------------------------------------------------------
def _init_linear(key, in_dim, out_dim):
    kw, kb = jax.random.split(key)
    bound = 1.0 / jnp.sqrt(jnp.float32(in_dim))
    w = jax.random.uniform(kw, (in_dim, out_dim), jnp.float32, -bound, bound)
    b = jax.random.uniform(kb, (1, out_dim), jnp.float32, -bound, bound)
    return w, b


def init_encoder_cl_params(key, o_dim, z_dim=20, h_dim=256):
    k1, k2, k3 = jax.random.split(key, 3)
    w1, b1 = _init_linear(k1, o_dim, h_dim)
    w2, b2 = _init_linear(k2, h_dim, h_dim)
    w3, b3 = _init_linear(k3, h_dim, z_dim)
    # Pad the narrow z_dim head to 128 lanes so the kernel output is lane-dense.
    out_pad = _round_up(max(z_dim, 128), 128)
    w3p = jnp.zeros((h_dim, out_pad), jnp.float32).at[:, :z_dim].set(w3)
    b3p = jnp.zeros((1, out_pad), jnp.float32).at[:, :z_dim].set(b3)
    # Weights in bf16 (MXU-native, half the HBM->VMEM bytes); biases stay f32.
    # TODO(synk): keep an f32 master copy if bit-parity with an f32 torch ref matters.
    enc = (w1.astype(jnp.bfloat16), b1,
           w2.astype(jnp.bfloat16), b2,
           w3p.astype(jnp.bfloat16), b3p)
    return {"enc": enc, "z_dim": z_dim}


# ----------------------------------------------------------------------------
# Top-level forward (mirrors EncoderCL.forward)
# ----------------------------------------------------------------------------
def _choose_row_tile(B):
    r8 = _round_up(max(B, 8), 8)   # sublane-aligned
    return r8 if r8 <= 512 else 512  # cap at 512: big batches all share one compile


def encoder_cl_forward(params, o, o_neg):
    assert o.shape == o_neg.shape
    B = o.shape[0]
    z_dim = params["z_dim"]

    tb = _choose_row_tile(B)
    R = _round_up(max(B, tb), tb)
    if R != B:  # only pads when B is not already tile-aligned (<= tb-1 rows)
        o = jnp.pad(o, ((0, R - B), (0, 0)))
        o_neg = jnp.pad(o_neg, ((0, R - B), (0, 0)))

    z_pad, zn_pad = _encoder_cl_call(o, o_neg, params["enc"], tb=tb)
    # Downstream consumers that can handle the padded (R, 128) buffers should
    # read z_pad/zn_pad directly; the slice below is for exact-shape return.
    return z_pad[:B, :z_dim], zn_pad[:B, :z_dim]


if __name__ == "__main__":
    key = jax.random.PRNGKey(0)
    k_params, k_o, k_on = jax.random.split(key, 3)

    B, O_DIM, Z_DIM, H_DIM = 8, 32, 20, 256

    params = init_encoder_cl_params(k_params, O_DIM, Z_DIM, H_DIM)

    o = jax.random.normal(k_o, (B, O_DIM), jnp.float32)
    o_neg = jax.random.normal(k_on, (B, O_DIM), jnp.float32)

    z, z_neg = encoder_cl_forward(params, o, o_neg)
    jax.block_until_ready((z, z_neg))

    assert z.shape == (B, Z_DIM)
    assert z_neg.shape == (B, Z_DIM)
    assert bool(jnp.all(jnp.isfinite(z))) and bool(jnp.all(jnp.isfinite(z_neg)))

    print("KERNEL_OK")
</pallas_src>

<mosaic_0001>
module attributes {stable_mosaic.version = 11 : i64} {
  func.func @_encoder_cl_kernel(%arg0: i32, %arg1: memref<8x32xf32, #tpu.memory_space<vmem>>, %arg2: memref<8x32xf32, #tpu.memory_space<vmem>>, %arg3: memref<32x256xbf16, #tpu.memory_space<vmem>>, %arg4: memref<1x256xf32, #tpu.memory_space<vmem>>, %arg5: memref<256x256xbf16, #tpu.memory_space<vmem>>, %arg6: memref<1x256xf32, #tpu.memory_space<vmem>>, %arg7: memref<256x128xbf16, #tpu.memory_space<vmem>>, %arg8: memref<1x128xf32, #tpu.memory_space<vmem>>, %arg9: memref<8x128xf32, #tpu.memory_space<vmem>>, %arg10: memref<8x128xf32, #tpu.memory_space<vmem>>) attributes {dimension_semantics = [#tpu.dimension_semantics<parallel>], iteration_bounds = array<i64: 1>, scalar_prefetch = 0 : i64, scratch_operands = 0 : i64, tpu.core_type = #tpu.core_type<tc>, window_params = [{transform_indices = @transform_0, window_bounds = array<i64: 8, 32>}, {transform_indices = @transform_1, window_bounds = array<i64: 8, 32>}, {pipeline_mode = #tpu.pipeline_mode<synchronous>, transform_indices = @transform_2, window_bounds = array<i64: 32, 256>}, {pipeline_mode = #tpu.pipeline_mode<synchronous>, transform_indices = @transform_3, window_bounds = array<i64: 1, 256>}, {pipeline_mode = #tpu.pipeline_mode<synchronous>, transform_indices = @transform_4, window_bounds = array<i64: 256, 256>}, {pipeline_mode = #tpu.pipeline_mode<synchronous>, transform_indices = @transform_5, window_bounds = array<i64: 1, 256>}, {pipeline_mode = #tpu.pipeline_mode<synchronous>, transform_indices = @transform_6, window_bounds = array<i64: 256, 128>}, {pipeline_mode = #tpu.pipeline_mode<synchronous>, transform_indices = @transform_7, window_bounds = array<i64: 1, 128>}, {transform_indices = @transform_8, window_bounds = array<i64: 8, 128>}, {transform_indices = @transform_9, window_bounds = array<i64: 8, 128>}]} {
    %c0 = arith.constant 0 : index
    %c0_0 = arith.constant 0 : index
    %0 = vector.load %arg1[%c0, %c0_0] : memref<8x32xf32, #tpu.memory_space<vmem>>, vector<8x32xf32>
    %1 = arith.truncf %0 : vector<8x32xf32> to vector<8x32xbf16>
    %c0_1 = arith.constant 0 : index
    %c0_2 = arith.constant 0 : index
    %2 = vector.load %arg3[%c0_1, %c0_2] : memref<32x256xbf16, #tpu.memory_space<vmem>>, vector<32x256xbf16>
    %cst = arith.constant dense<0.000000e+00> : vector<8x256xf32>
    %3 = tpu.matmul %1, %2, %cst {dimension_numbers = #tpu.dot_dimension_numbers<[1], [0], [0], [1], [0, 0, 1, 1], [], []>} : vector<8x32xbf16>, vector<32x256xbf16>, vector<8x256xf32> -> vector<8x256xf32>
    %c0_3 = arith.constant 0 : index
    %c0_4 = arith.constant 0 : index
    %4 = vector.load %arg4[%c0_3, %c0_4] : memref<1x256xf32, #tpu.memory_space<vmem>>, vector<1x256xf32>
    %5 = vector.broadcast %4 : vector<1x256xf32> to vector<8x256xf32>
    %6 = arith.addf %3, %5 : vector<8x256xf32>
    %cst_5 = arith.constant 0.000000e+00 : f32
    %7 = vector.broadcast %cst_5 : f32 to vector<8x256xf32>
    %8 = arith.maximumf %6, %7 : vector<8x256xf32>
    %9 = arith.truncf %8 : vector<8x256xf32> to vector<8x256xbf16>
    %c0_6 = arith.constant 0 : index
    %c0_7 = arith.constant 0 : index
    %10 = vector.load %arg5[%c0_6, %c0_7] : memref<256x256xbf16, #tpu.memory_space<vmem>>, vector<256x256xbf16>
    %cst_8 = arith.constant dense<0.000000e+00> : vector<8x256xf32>
    %11 = tpu.matmul %9, %10, %cst_8 {dimension_numbers = #tpu.dot_dimension_numbers<[1], [0], [0], [1], [0, 0, 1, 1], [], []>} : vector<8x256xbf16>, vector<256x256xbf16>, vector<8x256xf32> -> vector<8x256xf32>
    %c0_9 = arith.constant 0 : index
    %c0_10 = arith.constant 0 : index
    %12 = vector.load %arg6[%c0_9, %c0_10] : memref<1x256xf32, #tpu.memory_space<vmem>>, vector<1x256xf32>
    %13 = vector.broadcast %12 : vector<1x256xf32> to vector<8x256xf32>
    %14 = arith.addf %11, %13 : vector<8x256xf32>
    %cst_11 = arith.constant 0.000000e+00 : f32
    %15 = vector.broadcast %cst_11 : f32 to vector<8x256xf32>
    %16 = arith.maximumf %14, %15 : vector<8x256xf32>
    %17 = arith.truncf %16 : vector<8x256xf32> to vector<8x256xbf16>
    %c0_12 = arith.constant 0 : index
    %c0_13 = arith.constant 0 : index
    %18 = vector.load %arg7[%c0_12, %c0_13] : memref<256x128xbf16, #tpu.memory_space<vmem>>, vector<256x128xbf16>
    %cst_14 = arith.constant dense<0.000000e+00> : vector<8x128xf32>
    %19 = tpu.matmul %17, %18, %cst_14 {dimension_numbers = #tpu.dot_dimension_numbers<[1], [0], [0], [1], [0, 0, 1, 1], [], []>} : vector<8x256xbf16>, vector<256x128xbf16>, vector<8x128xf32> -> vector<8x128xf32>
    %c0_15 = arith.constant 0 : index
    %c0_16 = arith.constant 0 : index
    %20 = vector.load %arg8[%c0_15, %c0_16] : memref<1x128xf32, #tpu.memory_space<vmem>>, vector<1x128xf32>
    %21 = vector.broadcast %20 : vector<1x128xf32> to vector<8x128xf32>
    %22 = arith.addf %19, %21 : vector<8x128xf32>
    %c0_17 = arith.constant 0 : index
    %c0_18 = arith.constant 0 : index
    %23 = vector.load %arg9[%c0_17, %c0_18] : memref<8x128xf32, #tpu.memory_space<vmem>>, vector<8x128xf32>
    tpu.vector_store %arg9[%c0_17, %c0_18], %22 {strides = array<i32>} : memref<8x128xf32, #tpu.memory_space<vmem>>, vector<8x128xf32>,
    %c0_19 = arith.constant 0 : index
    %c0_20 = arith.constant 0 : index
    %24 = vector.load %arg2[%c0_19, %c0_20] : memref<8x32xf32, #tpu.memory_space<vmem>>, vector<8x32xf32>
    %25 = arith.truncf %24 : vector<8x32xf32> to vector<8x32xbf16>
    %c0_21 = arith.constant 0 : index
    %c0_22 = arith.constant 0 : index
    %26 = vector.load %arg3[%c0_21, %c0_22] : memref<32x256xbf16, #tpu.memory_space<vmem>>, vector<32x256xbf16>
    %cst_23 = arith.constant dense<0.000000e+00> : vector<8x256xf32>
    %27 = tpu.matmul %25, %26, %cst_23 {dimension_numbers = #tpu.dot_dimension_numbers<[1], [0], [0], [1], [0, 0, 1, 1], [], []>} : vector<8x32xbf16>, vector<32x256xbf16>, vector<8x256xf32> -> vector<8x256xf32>
    %c0_24 = arith.constant 0 : index
    %c0_25 = arith.constant 0 : index
    %28 = vector.load %arg4[%c0_24, %c0_25] : memref<1x256xf32, #tpu.memory_space<vmem>>, vector<1x256xf32>
    %29 = vector.broadcast %28 : vector<1x256xf32> to vector<8x256xf32>
    %30 = arith.addf %27, %29 : vector<8x256xf32>
    %cst_26 = arith.constant 0.000000e+00 : f32
    %31 = vector.broadcast %cst_26 : f32 to vector<8x256xf32>
    %32 = arith.maximumf %30, %31 : vector<8x256xf32>
    %33 = arith.truncf %32 : vector<8x256xf32> to vector<8x256xbf16>
    %c0_27 = arith.constant 0 : index
    %c0_28 = arith.constant 0 : index
    %34 = vector.load %arg5[%c0_27, %c0_28] : memref<256x256xbf16, #tpu.memory_space<vmem>>, vector<256x256xbf16>
    %cst_29 = arith.constant dense<0.000000e+00> : vector<8x256xf32>
    %35 = tpu.matmul %33, %34, %cst_29 {dimension_numbers = #tpu.dot_dimension_numbers<[1], [0], [0], [1], [0, 0, 1, 1], [], []>} : vector<8x256xbf16>, vector<256x256xbf16>, vector<8x256xf32> -> vector<8x256xf32>
    %c0_30 = arith.constant 0 : index
    %c0_31 = arith.constant 0 : index
    %36 = vector.load %arg6[%c0_30, %c0_31] : memref<1x256xf32, #tpu.memory_space<vmem>>, vector<1x256xf32>
    %37 = vector.broadcast %36 : vector<1x256xf32> to vector<8x256xf32>
    %38 = arith.addf %35, %37 : vector<8x256xf32>
    %cst_32 = arith.constant 0.000000e+00 : f32
    %39 = vector.broadcast %cst_32 : f32 to vector<8x256xf32>
    %40 = arith.maximumf %38, %39 : vector<8x256xf32>
    %41 = arith.truncf %40 : vector<8x256xf32> to vector<8x256xbf16>
    %c0_33 = arith.constant 0 : index
    %c0_34 = arith.constant 0 : index
    %42 = vector.load %arg7[%c0_33, %c0_34] : memref<256x128xbf16, #tpu.memory_space<vmem>>, vector<256x128xbf16>
    %cst_35 = arith.constant dense<0.000000e+00> : vector<8x128xf32>
    %43 = tpu.matmul %41, %42, %cst_35 {dimension_numbers = #tpu.dot_dimension_numbers<[1], [0], [0], [1], [0, 0, 1, 1], [], []>} : vector<8x256xbf16>, vector<256x128xbf16>, vector<8x128xf32> -> vector<8x128xf32>
    %c0_36 = arith.constant 0 : index
    %c0_37 = arith.constant 0 : index
    %44 = vector.load %arg8[%c0_36, %c0_37] : memref<1x128xf32, #tpu.memory_space<vmem>>, vector<1x128xf32>
    %45 = vector.broadcast %44 : vector<1x128xf32> to vector<8x128xf32>
    %46 = arith.addf %43, %45 : vector<8x128xf32>
    %c0_38 = arith.constant 0 : index
    %c0_39 = arith.constant 0 : index
    %47 = vector.load %arg10[%c0_38, %c0_39] : memref<8x128xf32, #tpu.memory_space<vmem>>, vector<8x128xf32>
    tpu.vector_store %arg10[%c0_38, %c0_39], %46 {strides = array<i32>} : memref<8x128xf32, #tpu.memory_space<vmem>>, vector<8x128xf32>,
    return
  }
  func.func @transform_0(%arg0: i32) -> (i32, i32) {
    %c0_i32 = arith.constant 0 : i32
    %c0_i32_0 = arith.constant 0 : i32
    return %arg0, %c0_i32 : i32, i32
  }
  func.func @transform_1(%arg0: i32) -> (i32, i32) {
    %c0_i32 = arith.constant 0 : i32
    %c0_i32_0 = arith.constant 0 : i32
    return %arg0, %c0_i32 : i32, i32
  }
  func.func @transform_2(%arg0: i32) -> (i32, i32) {
    %c0_i32 = arith.constant 0 : i32
    %c0_i32_0 = arith.constant 0 : i32
    %c0_i32_1 = arith.constant 0 : i32
    return %c0_i32, %c0_i32_0 : i32, i32
  }
  func.func @transform_3(%arg0: i32) -> (i32, i32) {
    %c0_i32 = arith.constant 0 : i32
    %c0_i32_0 = arith.constant 0 : i32
    %c0_i32_1 = arith.constant 0 : i32
    return %c0_i32, %c0_i32_0 : i32, i32
  }
  func.func @transform_4(%arg0: i32) -> (i32, i32) {
    %c0_i32 = arith.constant 0 : i32
    %c0_i32_0 = arith.constant 0 : i32
    %c0_i32_1 = arith.constant 0 : i32
    return %c0_i32, %c0_i32_0 : i32, i32
  }
  func.func @transform_5(%arg0: i32) -> (i32, i32) {
    %c0_i32 = arith.constant 0 : i32
    %c0_i32_0 = arith.constant 0 : i32
    %c0_i32_1 = arith.constant 0 : i32
    return %c0_i32, %c0_i32_0 : i32, i32
  }
  func.func @transform_6(%arg0: i32) -> (i32, i32) {
    %c0_i32 = arith.constant 0 : i32
    %c0_i32_0 = arith.constant 0 : i32
    %c0_i32_1 = arith.constant 0 : i32
    return %c0_i32, %c0_i32_0 : i32, i32
  }
  func.func @transform_7(%arg0: i32) -> (i32, i32) {
    %c0_i32 = arith.constant 0 : i32
    %c0_i32_0 = arith.constant 0 : i32
    %c0_i32_1 = arith.constant 0 : i32
    return %c0_i32, %c0_i32_0 : i32, i32
  }
  func.func @transform_8(%arg0: i32) -> (i32, i32) {
    %c0_i32 = arith.constant 0 : i32
    %c0_i32_0 = arith.constant 0 : i32
    return %arg0, %c0_i32 : i32, i32
  }
  func.func @transform_9(%arg0: i32) -> (i32, i32) {
    %c0_i32 = arith.constant 0 : i32
    %c0_i32_0 = arith.constant 0 : i32
    return %arg0, %c0_i32 : i32, i32
  }
}

</mosaic_0001>

<llo_original>
// kernel: tpu_custom_call.1
$region0: #{tpu_custom_call.1}
  #allocation0 [shape = 'u32[]', space=smem, size = 0x4, offset = 0x4, fixed_abs, tag = 'smem constant byte address 0x4 - core index']
  #allocation1 [shape = 'u32[144,128]{1,0:T(1,128)}', space=vmem, size = 0x12000, scoped, tag = 'internal scratch']
  %s0 = inlined_call_operand.hbm [shape: f32[8,32], index: 0, kind: input, shape index: {}]
  %s1 = inlined_call_operand.hbm [shape: f32[8,32], index: 1, kind: input, shape index: {}]
  %s2 = inlined_call_operand.hbm [shape: bf16[32,256], index: 2, kind: input, shape index: {}]
  %s3 = inlined_call_operand.vmem [shape: f32[1,256], index: 3, kind: input, shape index: {}]
  %s4 = inlined_call_operand.hbm [shape: bf16[256,256], index: 4, kind: input, shape index: {}]
  %s5 = inlined_call_operand.vmem [shape: f32[1,256], index: 5, kind: input, shape index: {}]
  %s6 = inlined_call_operand.hbm [shape: bf16[256,128], index: 6, kind: input, shape index: {}]
  %s7 = inlined_call_operand.vmem [shape: f32[1,128], index: 7, kind: input, shape index: {}]
  %s8 = inlined_call_operand.hbm [shape: f32[8,128], index: 8, kind: output, shape index: {0}]
  %s9 = inlined_call_operand.hbm [shape: f32[8,128], index: 9, kind: output, shape index: {1}]
  %10 = xla_tuple %s8, %s9
  %s11 = sld [smem:[#allocation0]]
  $region70: #{tpu_custom_call.1} parent=0
    _
  %s13 = ssub.s32 1, %s11
  %s14 = scalar_select 0, %s13, %s11
  $region1: #{tpu_custom_call.1} parent=0
    #allocation2 [shape = 'u8[4096]{0}', space=vmem, size = 0x1000, scoped, tag = 'input window, operand 0, single buffered']
    #allocation3 [shape = 's32[1]{0}', space=sflag, size = 0x4, scoped, tag = 'scoped memory for tpu_custom_call.1']
    #allocation4 [shape = 's32[1]{0}', space=sflag, size = 0x4, scoped, tag = 'scoped memory for tpu_custom_call.1']
    #allocation5 [shape = 'u8[4096]{0}', space=vmem, size = 0x1000, scoped, tag = 'input window, operand 1, single buffered']
    #allocation6 [shape = 's32[1]{0}', space=sflag, size = 0x4, scoped, tag = 'scoped memory for tpu_custom_call.1']
    #allocation7 [shape = 'u8[16384]{0}', space=vmem, size = 0x4000, scoped, tag = 'input window, operand 2, single buffered']
    #allocation8 [shape = 'u8[131072]{0}', space=vmem, size = 0x20000, scoped, tag = 'input window, operand 4, single buffered']
    #allocation9 [shape = 's32[1]{0}', space=sflag, size = 0x4, scoped, tag = 'scoped memory for tpu_custom_call.1']
    #allocation10 [shape = 'u8[65536]{0}', space=vmem, size = 0x10000, scoped, tag = 'input window, operand 6, single buffered']
    #allocation11 [shape = 'u8[4096]{0}', space=vmem, size = 0x1000, scoped, tag = 'output window, operand 0, single buffered']
    #allocation12 [shape = 'u8[4096]{0}', space=vmem, size = 0x1000, scoped, tag = 'output window, operand 1, single buffered']
    #allocation13 [shape = 's32[1]{0}', space=sflag, size = 0x4, scoped, tag = 'scoped memory for tpu_custom_call.1']
    %15 = vsyncpa [#allocation3], 0
    %16 = vsyncpa [#allocation6], 0
    %17 = vsyncpa [#allocation9], 0
    %18 = vsyncpa [#allocation4], 0
    %19 = vsyncpa [#allocation13], 0
    // Predicated region
    $region2: #{tpu_custom_call.1} parent=1 // pred_check
      _
    $region3: #{tpu_custom_call.1} parent=1 // pred_check_branch
      %21 = sbr.rel (0) target = $region5
    $region4: #{tpu_custom_call.1} parent=1 // pred_region
      %s23 = ssub.s32 128, 128
      %24 = vsyncadd [#allocation3], %s23
      %s26 = sshll.u32 [#allocation2], 4
      %s27 = int_to_ptr.vmem [resolvable:$true] %s26
      %29 = dma.hbm_to_vmem [thread:$0]  %s0, 128, %s27, [#allocation3]
    $region5: #{tpu_custom_call.1} parent=1 // pred_fallthru
      _
    // Predicated region
    $region6: #{tpu_custom_call.1} parent=1 // pred_check
      _
    $region7: #{tpu_custom_call.1} parent=1 // pred_check_branch
      %31 = sbr.rel (0) target = $region9
    $region8: #{tpu_custom_call.1} parent=1 // pred_region
      %s33 = ssub.s32 128, 128
      %34 = vsyncadd [#allocation6], %s33
      %s36 = sshll.u32 [#allocation5], 4
      %s37 = int_to_ptr.vmem [resolvable:$true] %s36
      %39 = dma.hbm_to_vmem [thread:$0]  %s1, 128, %s37, [#allocation6]
    $region9: #{tpu_custom_call.1} parent=1 // pred_fallthru
      _
    // Predicated region
    $region10: #{tpu_custom_call.1} parent=1 // pred_check
      _
    $region11: #{tpu_custom_call.1} parent=1 // pred_check_branch
      %41 = sbr.rel (0) target = $region13
    $region12: #{tpu_custom_call.1} parent=1 // pred_region
      %s43 = ssub.s32 512, 512
      %44 = vsyncadd [#allocation6], %s43
      %s45 = sshll.u32 [#allocation7], 4
      %s46 = int_to_ptr.vmem [resolvable:$true] %s45
      %51 = dma.hbm_to_vmem [thread:$0]  %s2, 512, %s46, [#allocation6], 128, 128, 8
    $region13: #{tpu_custom_call.1} parent=1 // pred_fallthru
      _
    // Predicated region
    $region14: #{tpu_custom_call.1} parent=1 // pred_check
      _
    $region15: #{tpu_custom_call.1} parent=1 // pred_check_branch
      %53 = sbr.rel (0) target = $region17
    $region16: #{tpu_custom_call.1} parent=1 // pred_region
      _
    $region17: #{tpu_custom_call.1} parent=1 // pred_fallthru
      _
    // Predicated region
    $region18: #{tpu_custom_call.1} parent=1 // pred_check
      _
    $region19: #{tpu_custom_call.1} parent=1 // pred_check_branch
      %55 = sbr.rel (0) target = $region21
    $region20: #{tpu_custom_call.1} parent=1 // pred_region
      %s57 = ssub.s32 4096, 4096
      %58 = vsyncadd [#allocation9], %s57
      %s59 = sshll.u32 [#allocation8], 4
      %s60 = int_to_ptr.vmem [resolvable:$true] %s59
      %65 = dma.hbm_to_vmem [thread:$0]  %s4, 4096, %s60, [#allocation9], 128, 128, 8
    $region21: #{tpu_custom_call.1} parent=1 // pred_fallthru
      _
    // Predicated region
    $region22: #{tpu_custom_call.1} parent=1 // pred_check
      _
    $region23: #{tpu_custom_call.1} parent=1 // pred_check_branch
      %67 = sbr.rel (0) target = $region25
    $region24: #{tpu_custom_call.1} parent=1 // pred_region
      _
    $region25: #{tpu_custom_call.1} parent=1 // pred_fallthru
      _
    // Predicated region
    $region26: #{tpu_custom_call.1} parent=1 // pred_check
      _
    $region27: #{tpu_custom_call.1} parent=1 // pred_check_branch
      %69 = sbr.rel (0) target = $region29
    $region28: #{tpu_custom_call.1} parent=1 // pred_region
      %s71 = ssub.s32 2048, 2048
      %72 = vsyncadd [#allocation9], %s71
      %s73 = sshll.u32 [#allocation10], 4
      %s74 = int_to_ptr.vmem [resolvable:$true] %s73
      %79 = dma.hbm_to_vmem [thread:$0]  %s6, 2048, %s74, [#allocation9], 64, 64, 4
    $region29: #{tpu_custom_call.1} parent=1 // pred_fallthru
      _
    // Predicated region
    $region30: #{tpu_custom_call.1} parent=1 // pred_check
      _
    $region31: #{tpu_custom_call.1} parent=1 // pred_check_branch
      %81 = sbr.rel (0) target = $region33
    $region32: #{tpu_custom_call.1} parent=1 // pred_region
      _
    $region33: #{tpu_custom_call.1} parent=1 // pred_fallthru
      _
    // Predicated region
    $region34: #{tpu_custom_call.1} parent=1 // pred_check
      _
    $region35: #{tpu_custom_call.1} parent=1 // pred_check_branch
      %83 = sbr.rel (0) target = $region37
    $region36: #{tpu_custom_call.1} parent=1 // pred_region
      %84 = dma.done [#allocation3], 128
    $region37: #{tpu_custom_call.1} parent=1 // pred_fallthru
      _
    // Predicated region
    $region38: #{tpu_custom_call.1} parent=1 // pred_check
      _
    $region39: #{tpu_custom_call.1} parent=1 // pred_check_branch
      %86 = sbr.rel (0) target = $region41
    $region40: #{tpu_custom_call.1} parent=1 // pred_region
      %87 = dma.done [#allocation6], 128
    $region41: #{tpu_custom_call.1} parent=1 // pred_fallthru
      _
    // Predicated region
    $region42: #{tpu_custom_call.1} parent=1 // pred_check
      _
    $region43: #{tpu_custom_call.1} parent=1 // pred_check_branch
      %89 = sbr.rel (0) target = $region45
    $region44: #{tpu_custom_call.1} parent=1 // pred_region
      %90 = dma.done [#allocation6], 512
    $region45: #{tpu_custom_call.1} parent=1 // pred_fallthru
      _
    // Predicated region
    $region46: #{tpu_custom_call.1} parent=1 // pred_check
      _
    $region47: #{tpu_custom_call.1} parent=1 // pred_check_branch
      %92 = sbr.rel (0) target = $region49
    $region48: #{tpu_custom_call.1} parent=1 // pred_region
      %93 = dma.done [#allocation9], 4096
    $region49: #{tpu_custom_call.1} parent=1 // pred_fallthru
      _
    // Predicated region
    $region50: #{tpu_custom_call.1} parent=1 // pred_check
      _
    $region51: #{tpu_custom_call.1} parent=1 // pred_check_branch
      %95 = sbr.rel (0) target = $region53
    $region52: #{tpu_custom_call.1} parent=1 // pred_region
      %96 = dma.done [#allocation9], 2048
    $region53: #{tpu_custom_call.1} parent=1 // pred_fallthru
      _
    %v98 = vld [vmem:[#allocation2] sm:$0xff]
    %v99 = vpack.c.bf16 %v98, %v98
    %v100 = vld [vmem:[#allocation7] sm:$0xff]
    %v101 = vld [vmem:[#allocation7 + $0x8] sm:$0xff]
    %v102 = vld [vmem:[#allocation7 + $0x10] sm:$0xff]
    %v103 = vld [vmem:[#allocation7 + $0x18] sm:$0xff]
    %v104 = vld [vmem:[%s3] sm:$0x3]
    %v106 = vlaneseq
    %v107 = vshrl.u32 %v106, 7
    %v108 = vsub.s32 0, %v107
    %v109 = vrot.slane %v104, %v108
    %v110 = vlaneseq
    %v111 = vshrl.u32 %v110, 7
    %v112 = vsub.s32 1, %v111
    %v113 = vrot.slane %v104, %v112
    %v120 = vunpack.c.l.b16 %v100
    %v121 = vunpack.c.h.b16 %v100
    %v122 = vunpack.c.l.b16 %v101
    %v123 = vunpack.c.h.b16 %v101
    %v124 = vunpack.c.l.b16 %v102
    %v125 = vunpack.c.h.b16 %v102
    %v126 = vunpack.c.l.b16 %v103
    %v127 = vunpack.c.h.b16 %v103
    %v128 = vpack.c.b16 %v122, %v120
    %v129 = vpack.c.b16 %v123, %v121
    %v130 = vpack.c.b16 %v126, %v124
    %v131 = vpack.c.b16 %v127, %v125
    %vm136 = vcmask 261120
    %v138 = vsel %vm136, %v99, 0
    %140 = vmatprep.subr.bf16.mxu0 %v129
    %141 = vmatpush1.bf16.msra.mxu0 %v128
    %142 = vmatprep.subr.bf16.mxu0 %v131
    %143 = vmatpush1.bf16.msra.mxu0 %v130
    %144 = vmatprep.subr.bf16.mxu0 0
    %145 = vmatpush1.bf16.msra.mxu0 0
    %146 = vmatprep.subr.bf16.mxu0 0
    %147 = vmatpush1.bf16.msra.mxu0 0
    %148 = vmatprep.subr.bf16.mxu0 0
    %149 = vmatpush1.bf16.msra.mxu0 0
    %150 = vmatprep.subr.bf16.mxu0 0
    %151 = vmatpush1.bf16.msra.mxu0 0
    %152 = vmatprep.subr.bf16.mxu0 0
    %153 = vmatpush1.bf16.msra.mxu0 0
    %154 = vmatprep.subr.bf16.mxu0 0
    %155 = vmatpush1.bf16.msra.mxu0 0
    %156 = vmatprep.subr.bf16.mxu0 0
    %157 = vmatpush1.bf16.msra.mxu0 0
    %158 = vmatprep.subr.bf16.mxu0 0
    %159 = vmatpush1.bf16.msra.mxu0 0
    %160 = vmatprep.subr.bf16.mxu0 0
    %161 = vmatpush1.bf16.msra.mxu0 0
    %162 = vmatprep.subr.bf16.mxu0 0
    %163 = vmatpush1.bf16.msra.mxu0 0
    %164 = vmatprep.subr.bf16.mxu0 0
    %165 = vmatpush1.bf16.msra.mxu0 0
    %166 = vmatprep.subr.bf16.mxu0 0
    %167 = vmatpush1.bf16.msra.mxu0 0
    %168 = vmatprep.subr.bf16.mxu0 0
    %169 = vmatpush1.bf16.msra.mxu0 0
    %170 = vmatprep.subr.bf16.mxu0 0
    %171 = vmatpush1.bf16.msra.mxu0 0
    %172 = vmatprep.mubr.bf16.mxu0 0
    %173 = vmatmul.mubr.bf16.gmra.mrb[0].mxu0 %v138
    %v174 = vpop.f32.mrb[0].mxu0
    %v175 = vadd.f32 %v109, %v174
    %v176 = vpop.f32.mrb[0].mxu0
    %v177 = vadd.f32 %v113, %v176
    %v178 = vpop.f32.mrb[0].mxu0
    %v179 = vpop.f32.mrb[0].mxu0
    %180 = vdwg.mxu0
    %v181 = vmax.f32 %v175, 0.0
    %v182 = vmax.f32 %v177, 0.0
    %v183 = vpack.c.bf16 %v181, %v181
    %v184 = vpack.c.bf16 %v182, %v182
    %v185 = vld [vmem:[#allocation8] sm:$0xff]
    %v186 = vld [vmem:[#allocation8 + $0x8] sm:$0xff]
    %v187 = vld [vmem:[#allocation8 + $0x10] sm:$0xff]
    %v188 = vld [vmem:[#allocation8 + $0x18] sm:$0xff]
    %v189 = vld [vmem:[#allocation8 + $0x20] sm:$0xff]
    %v190 = vld [vmem:[#allocation8 + $0x28] sm:$0xff]
    %v191 = vld [vmem:[#allocation8 + $0x30] sm:$0xff]
    %v192 = vld [vmem:[#allocation8 + $0x38] sm:$0xff]
    %v193 = vld [vmem:[#allocation8 + $0x40] sm:$0xff]
    %v194 = vld [vmem:[#allocation8 + $0x48] sm:$0xff]
    %v195 = vld [vmem:[#allocation8 + $0x50] sm:$0xff]
    %v196 = vld [vmem:[#allocation8 + $0x58] sm:$0xff]
    %v197 = vld [vmem:[#allocation8 + $0x60] sm:$0xff]
    %v198 = vld [vmem:[#allocation8 + $0x68] sm:$0xff]
    %v199 = vld [vmem:[#allocation8 + $0x70] sm:$0xff]
    %v200 = vld [vmem:[#allocation8 + $0x78] sm:$0xff]
    %v201 = vld [vmem:[#allocation8 + $0x80] sm:$0xff]
    %v202 = vld [vmem:[#allocation8 + $0x88] sm:$0xff]
    %v203 = vld [vmem:[#allocation8 + $0x90] sm:$0xff]
    %v204 = vld [vmem:[#allocation8 + $0x98] sm:$0xff]
    %v205 = vld [vmem:[#allocation8 + $0xa0] sm:$0xff]
    %v206 = vld [vmem:[#allocation8 + $0xa8] sm:$0xff]
    %v207 = vld [vmem:[#allocation8 + $0xb0] sm:$0xff]
    %v208 = vld [vmem:[#allocation8 + $0xb8] sm:$0xff]
    %v209 = vld [vmem:[#allocation8 + $0xc0] sm:$0xff]
    %v210 = vld [vmem:[#allocation8 + $0xc8] sm:$0xff]
    %v211 = vld [vmem:[#allocation8 + $0xd0] sm:$0xff]
    %v212 = vld [vmem:[#allocation8 + $0xd8] sm:$0xff]
    %v213 = vld [vmem:[#allocation8 + $0xe0] sm:$0xff]
    %v214 = vld [vmem:[#allocation8 + $0xe8] sm:$0xff]
    %v215 = vld [vmem:[#allocation8 + $0xf0] sm:$0xff]
    %v216 = vld [vmem:[#allocation8 + $0xf8] sm:$0xff]
    %v217 = vld [vmem:[%s5] sm:$0x3]
    %v219 = vlaneseq
    %v220 = vshrl.u32 %v219, 7
    %v221 = vsub.s32 0, %v220
    %v222 = vrot.slane %v217, %v221
    %v223 = vlaneseq
    %v224 = vshrl.u32 %v223, 7
    %v225 = vsub.s32 1, %v224
    %v226 = vrot.slane %v217, %v225
    %v261 = vunpack.c.l.b16 %v185
    %v262 = vunpack.c.h.b16 %v185
    %v263 = vunpack.c.l.b16 %v186
    %v264 = vunpack.c.h.b16 %v186
    %v265 = vunpack.c.l.b16 %v187
    %v266 = vunpack.c.h.b16 %v187
    %v267 = vunpack.c.l.b16 %v188
    %v268 = vunpack.c.h.b16 %v188
    %v269 = vunpack.c.l.b16 %v189
    %v270 = vunpack.c.h.b16 %v189
    %v271 = vunpack.c.l.b16 %v190
    %v272 = vunpack.c.h.b16 %v190
    %v273 = vunpack.c.l.b16 %v191
    %v274 = vunpack.c.h.b16 %v191
    %v275 = vunpack.c.l.b16 %v192
    %v276 = vunpack.c.h.b16 %v192
    %v277 = vunpack.c.l.b16 %v193
    %v278 = vunpack.c.h.b16 %v193
    %v279 = vunpack.c.l.b16 %v194
    %v280 = vunpack.c.h.b16 %v194
    %v281 = vunpack.c.l.b16 %v195
    %v282 = vunpack.c.h.b16 %v195
    %v283 = vunpack.c.l.b16 %v196
    %v284 = vunpack.c.h.b16 %v196
    %v285 = vunpack.c.l.b16 %v197
    %v286 = vunpack.c.h.b16 %v197
    %v287 = vunpack.c.l.b16 %v198
    %v288 = vunpack.c.h.b16 %v198
    %v289 = vunpack.c.l.b16 %v199
    %v290 = vunpack.c.h.b16 %v199
    %v291 = vunpack.c.l.b16 %v200
    %v292 = vunpack.c.h.b16 %v200
    %v293 = vunpack.c.l.b16 %v201
    %v294 = vunpack.c.h.b16 %v201
    %v295 = vunpack.c.l.b16 %v202
    %v296 = vunpack.c.h.b16 %v202
    %v297 = vunpack.c.l.b16 %v203
    %v298 = vunpack.c.h.b16 %v203
    %v299 = vunpack.c.l.b16 %v204
    %v300 = vunpack.c.h.b16 %v204
    %v301 = vunpack.c.l.b16 %v205
    %v302 = vunpack.c.h.b16 %v205
    %v303 = vunpack.c.l.b16 %v206
    %v304 = vunpack.c.h.b16 %v206
    %v305 = vunpack.c.l.b16 %v207
    %v306 = vunpack.c.h.b16 %v207
    %v307 = vunpack.c.l.b16 %v208
    %v308 = vunpack.c.h.b16 %v208
    %v309 = vunpack.c.l.b16 %v209
    %v310 = vunpack.c.h.b16 %v209
    %v311 = vunpack.c.l.b16 %v210
    %v312 = vunpack.c.h.b16 %v210
    %v313 = vunpack.c.l.b16 %v211
    %v314 = vunpack.c.h.b16 %v211
    %v315 = vunpack.c.l.b16 %v212
    %v316 = vunpack.c.h.b16 %v212
    %v317 = vunpack.c.l.b16 %v213
    %v318 = vunpack.c.h.b16 %v213
    %v319 = vunpack.c.l.b16 %v214
    %v320 = vunpack.c.h.b16 %v214
    %v321 = vunpack.c.l.b16 %v215
    %v322 = vunpack.c.h.b16 %v215
    %v323 = vunpack.c.l.b16 %v216
    %v324 = vunpack.c.h.b16 %v216
    %v325 = vpack.c.b16 %v263, %v261
    %v326 = vpack.c.b16 %v264, %v262
    %v327 = vpack.c.b16 %v267, %v265
    %v328 = vpack.c.b16 %v268, %v266
    %v329 = vpack.c.b16 %v271, %v269
    %v330 = vpack.c.b16 %v272, %v270
    %v331 = vpack.c.b16 %v275, %v273
    %v332 = vpack.c.b16 %v276, %v274
    %v333 = vpack.c.b16 %v279, %v277
    %v334 = vpack.c.b16 %v280, %v278
    %v335 = vpack.c.b16 %v283, %v281
    %v336 = vpack.c.b16 %v284, %v282
    %v337 = vpack.c.b16 %v287, %v285
    %v338 = vpack.c.b16 %v288, %v286
    %v339 = vpack.c.b16 %v291, %v289
    %v340 = vpack.c.b16 %v292, %v290
    %v341 = vpack.c.b16 %v295, %v293
    %v342 = vpack.c.b16 %v296, %v294
    %v343 = vpack.c.b16 %v299, %v297
    %v344 = vpack.c.b16 %v300, %v298
    %v345 = vpack.c.b16 %v303, %v301
    %v346 = vpack.c.b16 %v304, %v302
    %v347 = vpack.c.b16 %v307, %v305
    %v348 = vpack.c.b16 %v308, %v306
    %v349 = vpack.c.b16 %v311, %v309
    %v350 = vpack.c.b16 %v312, %v310
    %v351 = vpack.c.b16 %v315, %v313
    %v352 = vpack.c.b16 %v316, %v314
    %v353 = vpack.c.b16 %v319, %v317
    %v354 = vpack.c.b16 %v320, %v318
    %v355 = vpack.c.b16 %v323, %v321
    %v356 = vpack.c.b16 %v324, %v322
    %389 = vmatprep.subr.bf16.mxu0 %v326
    %390 = vmatpush1.bf16.msra.mxu0 %v325
    %391 = vmatprep.subr.bf16.mxu0 %v328
    %392 = vmatpush1.bf16.msra.mxu0 %v327
    %393 = vmatprep.subr.bf16.mxu0 %v330
    %394 = vmatpush1.bf16.msra.mxu0 %v329
    %395 = vmatprep.subr.bf16.mxu0 %v332
    %396 = vmatpush1.bf16.msra.mxu0 %v331
    %397 = vmatprep.subr.bf16.mxu0 %v334
    %398 = vmatpush1.bf16.msra.mxu0 %v333
    %399 = vmatprep.subr.bf16.mxu0 %v336
    %400 = vmatpush1.bf16.msra.mxu0 %v335
    %401 = vmatprep.subr.bf16.mxu0 %v338
    %402 = vmatpush1.bf16.msra.mxu0 %v337
    %403 = vmatprep.subr.bf16.mxu0 %v340
    %404 = vmatpush1.bf16.msra.mxu0 %v339
    %405 = vmatprep.subr.bf16.mxu0 %v342
    %406 = vmatpush1.bf16.msra.mxu0 %v341
    %407 = vmatprep.subr.bf16.mxu0 %v344
    %408 = vmatpush1.bf16.msra.mxu0 %v343
    %409 = vmatprep.subr.bf16.mxu0 %v346
    %410 = vmatpush1.bf16.msra.mxu0 %v345
    %411 = vmatprep.subr.bf16.mxu0 %v348
    %412 = vmatpush1.bf16.msra.mxu0 %v347
    %413 = vmatprep.subr.bf16.mxu0 %v350
    %414 = vmatpush1.bf16.msra.mxu0 %v349
    %415 = vmatprep.subr.bf16.mxu0 %v352
    %416 = vmatpush1.bf16.msra.mxu0 %v351
    %417 = vmatprep.subr.bf16.mxu0 %v354
    %418 = vmatpush1.bf16.msra.mxu0 %v353
    %419 = vmatprep.subr.bf16.mxu0 %v356
    %420 = vmatpush1.bf16.msra.mxu0 %v355
    %421 = vmatprep.mubr.bf16.mxu0 %v184
    %422 = vmatmul.mubr.bf16.gmra.mrb[0].mxu0 %v183
    %v423 = vpop.f32.mrb[0].mxu0
    %v424 = vadd.f32 %v222, %v423
    %v425 = vpop.f32.mrb[0].mxu0
    %v426 = vadd.f32 %v226, %v425
    %v427 = vpop.f32.mrb[0].mxu0
    %v428 = vpop.f32.mrb[0].mxu0
    %429 = vdwg.mxu0
    %v430 = vmax.f32 %v424, 0.0
    %v431 = vmax.f32 %v426, 0.0
    %v432 = vpack.c.bf16 %v430, %v430
    %v433 = vpack.c.bf16 %v431, %v431
    %v434 = vld [vmem:[#allocation10] sm:$0xf]
    %v435 = vld [vmem:[#allocation10 + $0x4] sm:$0xf]
    %v436 = vld [vmem:[#allocation10 + $0x8] sm:$0xf]
    %v437 = vld [vmem:[#allocation10 + $0xc] sm:$0xf]
    %v438 = vld [vmem:[#allocation10 + $0x10] sm:$0xf]
    %v439 = vld [vmem:[#allocation10 + $0x14] sm:$0xf]
    %v440 = vld [vmem:[#allocation10 + $0x18] sm:$0xf]
    %v441 = vld [vmem:[#allocation10 + $0x1c] sm:$0xf]
    %v442 = vld [vmem:[#allocation10 + $0x20] sm:$0xf]
    %v443 = vld [vmem:[#allocation10 + $0x24] sm:$0xf]
    %v444 = vld [vmem:[#allocation10 + $0x28] sm:$0xf]
    %v445 = vld [vmem:[#allocation10 + $0x2c] sm:$0xf]
    %v446 = vld [vmem:[#allocation10 + $0x30] sm:$0xf]
    %v447 = vld [vmem:[#allocation10 + $0x34] sm:$0xf]
    %v448 = vld [vmem:[#allocation10 + $0x38] sm:$0xf]
    %v449 = vld [vmem:[#allocation10 + $0x3c] sm:$0xf]
    %v450 = vld [vmem:[#allocation10 + $0x40] sm:$0xf]
    %v451 = vld [vmem:[#allocation10 + $0x44] sm:$0xf]
    %v452 = vld [vmem:[#allocation10 + $0x48] sm:$0xf]
    %v453 = vld [vmem:[#allocation10 + $0x4c] sm:$0xf]
    %v454 = vld [vmem:[#allocation10 + $0x50] sm:$0xf]
    %v455 = vld [vmem:[#allocation10 + $0x54] sm:$0xf]
    %v456 = vld [vmem:[#allocation10 + $0x58] sm:$0xf]
    %v457 = vld [vmem:[#allocation10 + $0x5c] sm:$0xf]
    %v458 = vld [vmem:[#allocation10 + $0x60] sm:$0xf]
    %v459 = vld [vmem:[#allocation10 + $0x64] sm:$0xf]
    %v460 = vld [vmem:[#allocation10 + $0x68] sm:$0xf]
    %v461 = vld [vmem:[#allocation10 + $0x6c] sm:$0xf]
    %v462 = vld [vmem:[#allocation10 + $0x70] sm:$0xf]
    %v463 = vld [vmem:[#allocation10 + $0x74] sm:$0xf]
    %v464 = vld [vmem:[#allocation10 + $0x78] sm:$0xf]
    %v465 = vld [vmem:[#allocation10 + $0x7c] sm:$0xf]
    %v466 = vld [vmem:[%s7] sm:$0x1]
    %v468 = vlaneseq
    %v469 = vshrl.u32 %v468, 7
    %v470 = vsub.s32 0, %v469
    %v471 = vrot.slane %v466, %v470
    %v505 = vunpack.c.l.b16 %v434
    %v506 = vunpack.c.l.b16 %v435
    %v507 = vunpack.c.l.b16 %v436
    %v508 = vunpack.c.l.b16 %v437
    %v509 = vunpack.c.l.b16 %v438
    %v510 = vunpack.c.l.b16 %v439
    %v511 = vunpack.c.l.b16 %v440
    %v512 = vunpack.c.l.b16 %v441
    %v513 = vunpack.c.l.b16 %v442
    %v514 = vunpack.c.l.b16 %v443
    %v515 = vunpack.c.l.b16 %v444
    %v516 = vunpack.c.l.b16 %v445
    %v517 = vunpack.c.l.b16 %v446
    %v518 = vunpack.c.l.b16 %v447
    %v519 = vunpack.c.l.b16 %v448
    %v520 = vunpack.c.l.b16 %v449
    %v521 = vunpack.c.l.b16 %v450
    %v522 = vunpack.c.l.b16 %v451
    %v523 = vunpack.c.l.b16 %v452
    %v524 = vunpack.c.l.b16 %v453
    %v525 = vunpack.c.l.b16 %v454
    %v526 = vunpack.c.l.b16 %v455
    %v527 = vunpack.c.l.b16 %v456
    %v528 = vunpack.c.l.b16 %v457
    %v529 = vunpack.c.l.b16 %v458
    %v530 = vunpack.c.l.b16 %v459
    %v531 = vunpack.c.l.b16 %v460
    %v532 = vunpack.c.l.b16 %v461
    %v533 = vunpack.c.l.b16 %v462
    %v534 = vunpack.c.l.b16 %v463
    %v535 = vunpack.c.l.b16 %v464
    %v536 = vunpack.c.l.b16 %v465
    %v537 = vpack.c.b16 %v506, %v505
    %v538 = vpack.c.b16 %v508, %v507
    %v539 = vpack.c.b16 %v510, %v509
    %v540 = vpack.c.b16 %v512, %v511
    %v541 = vpack.c.b16 %v514, %v513
    %v542 = vpack.c.b16 %v516, %v515
    %v543 = vpack.c.b16 %v518, %v517
    %v544 = vpack.c.b16 %v520, %v519
    %v545 = vpack.c.b16 %v522, %v521
    %v546 = vpack.c.b16 %v524, %v523
    %v547 = vpack.c.b16 %v526, %v525
    %v548 = vpack.c.b16 %v528, %v527
    %v549 = vpack.c.b16 %v530, %v529
    %v550 = vpack.c.b16 %v532, %v531
    %v551 = vpack.c.b16 %v534, %v533
    %v552 = vpack.c.b16 %v536, %v535
    %569 = vmatprep.subr.bf16.mxu0 0
    %570 = vmatpush1.bf16.msra.mxu0 %v537
    %571 = vmatprep.subr.bf16.mxu0 0
    %572 = vmatpush1.bf16.msra.mxu0 %v538
    %573 = vmatprep.subr.bf16.mxu0 0
    %574 = vmatpush1.bf16.msra.mxu0 %v539
    %575 = vmatprep.subr.bf16.mxu0 0
    %576 = vmatpush1.bf16.msra.mxu0 %v540
    %577 = vmatprep.subr.bf16.mxu0 0
    %578 = vmatpush1.bf16.msra.mxu0 %v541
    %579 = vmatprep.subr.bf16.mxu0 0
    %580 = vmatpush1.bf16.msra.mxu0 %v542
    %581 = vmatprep.subr.bf16.mxu0 0
    %582 = vmatpush1.bf16.msra.mxu0 %v543
    %583 = vmatprep.subr.bf16.mxu0 0
    %584 = vmatpush1.bf16.msra.mxu0 %v544
    %585 = vmatprep.subr.bf16.mxu0 0
    %586 = vmatpush1.bf16.msra.mxu0 %v545
    %587 = vmatprep.subr.bf16.mxu0 0
    %588 = vmatpush1.bf16.msra.mxu0 %v546
    %589 = vmatprep.subr.bf16.mxu0 0
    %590 = vmatpush1.bf16.msra.mxu0 %v547
    %591 = vmatprep.subr.bf16.mxu0 0
    %592 = vmatpush1.bf16.msra.mxu0 %v548
    %593 = vmatprep.subr.bf16.mxu0 0
    %594 = vmatpush1.bf16.msra.mxu0 %v549
    %595 = vmatprep.subr.bf16.mxu0 0
    %596 = vmatpush1.bf16.msra.mxu0 %v550
    %597 = vmatprep.subr.bf16.mxu0 0
    %598 = vmatpush1.bf16.msra.mxu0 %v551
    %599 = vmatprep.subr.bf16.mxu0 0
    %600 = vmatpush1.bf16.msra.mxu0 %v552
    %601 = vmatprep.mubr.bf16.mxu0 %v433
    %602 = vmatmul.mubr.bf16.gmra.mrb[0].mxu0 %v432
    %v603 = vpop.f32.mrb[0].mxu0
    %v604 = vadd.f32 %v471, %v603
    %v605 = vpop.f32.mrb[0].mxu0
    %v606 = vpop.f32.mrb[0].mxu0
    %v607 = vpop.f32.mrb[0].mxu0
    %608 = vdwg.mxu0
    %609 = vst [vmem:[#allocation11] sm:$0xff] %v604
    %v610 = vld [vmem:[#allocation5] sm:$0xff]
    %v611 = vpack.c.bf16 %v610, %v610
    %v612 = vld [vmem:[#allocation7] sm:$0xff]
    %v613 = vld [vmem:[#allocation7 + $0x8] sm:$0xff]
    %v614 = vld [vmem:[#allocation7 + $0x10] sm:$0xff]
    %v615 = vld [vmem:[#allocation7 + $0x18] sm:$0xff]
    %v616 = vld [vmem:[%s3] sm:$0x3]
    %v618 = vlaneseq
    %v619 = vshrl.u32 %v618, 7
    %v620 = vsub.s32 0, %v619
    %v621 = vrot.slane %v616, %v620
    %v622 = vlaneseq
    %v623 = vshrl.u32 %v622, 7
    %v624 = vsub.s32 1, %v623
    %v625 = vrot.slane %v616, %v624
    %v632 = vunpack.c.l.b16 %v612
    %v633 = vunpack.c.h.b16 %v612
    %v634 = vunpack.c.l.b16 %v613
    %v635 = vunpack.c.h.b16 %v613
    %v636 = vunpack.c.l.b16 %v614
    %v637 = vunpack.c.h.b16 %v614
    %v638 = vunpack.c.l.b16 %v615
    %v639 = vunpack.c.h.b16 %v615
    %v640 = vpack.c.b16 %v634, %v632
    %v641 = vpack.c.b16 %v635, %v633
    %v642 = vpack.c.b16 %v638, %v636
    %v643 = vpack.c.b16 %v639, %v637
    %v649 = vsel %vm136, %v611, 0
    %651 = vmatprep.subr.bf16.mxu0 %v641
    %652 = vmatpush1.bf16.msra.mxu0 %v640
    %653 = vmatprep.subr.bf16.mxu0 %v643
    %654 = vmatpush1.bf16.msra.mxu0 %v642
    %655 = vmatprep.subr.bf16.mxu0 0
    %656 = vmatpush1.bf16.msra.mxu0 0
    %657 = vmatprep.subr.bf16.mxu0 0
    %658 = vmatpush1.bf16.msra.mxu0 0
    %659 = vmatprep.subr.bf16.mxu0 0
    %660 = vmatpush1.bf16.msra.mxu0 0
    %661 = vmatprep.subr.bf16.mxu0 0
    %662 = vmatpush1.bf16.msra.mxu0 0
    %663 = vmatprep.subr.bf16.mxu0 0
    %664 = vmatpush1.bf16.msra.mxu0 0
    %665 = vmatprep.subr.bf16.mxu0 0
    %666 = vmatpush1.bf16.msra.mxu0 0
    %667 = vmatprep.subr.bf16.mxu0 0
    %668 = vmatpush1.bf16.msra.mxu0 0
    %669 = vmatprep.subr.bf16.mxu0 0
    %670 = vmatpush1.bf16.msra.mxu0 0
    %671 = vmatprep.subr.bf16.mxu0 0
    %672 = vmatpush1.bf16.msra.mxu0 0
    %673 = vmatprep.subr.bf16.mxu0 0
    %674 = vmatpush1.bf16.msra.mxu0 0
    %675 = vmatprep.subr.bf16.mxu0 0
    %676 = vmatpush1.bf16.msra.mxu0 0
    %677 = vmatprep.subr.bf16.mxu0 0
    %678 = vmatpush1.bf16.msra.mxu0 0
    %679 = vmatprep.subr.bf16.mxu0 0
    %680 = vmatpush1.bf16.msra.mxu0 0
    %681 = vmatprep.subr.bf16.mxu0 0
    %682 = vmatpush1.bf16.msra.mxu0 0
    %683 = vmatprep.mubr.bf16.mxu0 0
    %684 = vmatmul.mubr.bf16.gmra.mrb[0].mxu0 %v649
    %v685 = vpop.f32.mrb[0].mxu0
    %v686 = vadd.f32 %v621, %v685
    %v687 = vpop.f32.mrb[0].mxu0
    %v688 = vadd.f32 %v625, %v687
    %v689 = vpop.f32.mrb[0].mxu0
    %v690 = vpop.f32.mrb[0].mxu0
    %691 = vdwg.mxu0
    %v692 = vmax.f32 %v686, 0.0
    %v693 = vmax.f32 %v688, 0.0
    %v694 = vpack.c.bf16 %v692, %v692
    %v695 = vpack.c.bf16 %v693, %v693
    %v696 = vld [vmem:[#allocation8] sm:$0xff]
    %v697 = vld [vmem:[#allocation8 + $0x8] sm:$0xff]
    %v698 = vld [vmem:[#allocation8 + $0x10] sm:$0xff]
    %v699 = vld [vmem:[#allocation8 + $0x18] sm:$0xff]
    %v700 = vld [vmem:[#allocation8 + $0x20] sm:$0xff]
    %v701 = vld [vmem:[#allocation8 + $0x28] sm:$0xff]
    %v702 = vld [vmem:[#allocation8 + $0x30] sm:$0xff]
    %v703 = vld [vmem:[#allocation8 + $0x38] sm:$0xff]
    %v704 = vld [vmem:[#allocation8 + $0x40] sm:$0xff]
    %v705 = vld [vmem:[#allocation8 + $0x48] sm:$0xff]
    %v706 = vld [vmem:[#allocation8 + $0x50] sm:$0xff]
    %v707 = vld [vmem:[#allocation8 + $0x58] sm:$0xff]
    %v708 = vld [vmem:[#allocation8 + $0x60] sm:$0xff]
    %v709 = vld [vmem:[#allocation8 + $0x68] sm:$0xff]
    %v710 = vld [vmem:[#allocation8 + $0x70] sm:$0xff]
    %v711 = vld [vmem:[#allocation8 + $0x78] sm:$0xff]
    %v712 = vld [vmem:[#allocation8 + $0x80] sm:$0xff]
    %v713 = vld [vmem:[#allocation8 + $0x88] sm:$0xff]
    %v714 = vld [vmem:[#allocation8 + $0x90] sm:$0xff]
    %v715 = vld [vmem:[#allocation8 + $0x98] sm:$0xff]
    %v716 = vld [vmem:[#allocation8 + $0xa0] sm:$0xff]
    %v717 = vld [vmem:[#allocation8 + $0xa8] sm:$0xff]
    %v718 = vld [vmem:[#allocation8 + $0xb0] sm:$0xff]
    %v719 = vld [vmem:[#allocation8 + $0xb8] sm:$0xff]
    %v720 = vld [vmem:[#allocation8 + $0xc0] sm:$0xff]
    %v721 = vld [vmem:[#allocation8 + $0xc8] sm:$0xff]
    %v722 = vld [vmem:[#allocation8 + $0xd0] sm:$0xff]
    %v723 = vld [vmem:[#allocation8 + $0xd8] sm:$0xff]
    %v724 = vld [vmem:[#allocation8 + $0xe0] sm:$0xff]
    %v725 = vld [vmem:[#allocation8 + $0xe8] sm:$0xff]
    %v726 = vld [vmem:[#allocation8 + $0xf0] sm:$0xff]
    %v727 = vld [vmem:[#allocation8 + $0xf8] sm:$0xff]
    %v728 = vld [vmem:[%s5] sm:$0x3]
    %v730 = vlaneseq
    %v731 = vshrl.u32 %v730, 7
    %v732 = vsub.s32 0, %v731
    %v733 = vrot.slane %v728, %v732
    %v734 = vlaneseq
    %v735 = vshrl.u32 %v734, 7
    %v736 = vsub.s32 1, %v735
    %v737 = vrot.slane %v728, %v736
    %v772 = vunpack.c.l.b16 %v696
    %v773 = vunpack.c.h.b16 %v696
    %v774 = vunpack.c.l.b16 %v697
    %v775 = vunpack.c.h.b16 %v697
    %v776 = vunpack.c.l.b16 %v698
    %v777 = vunpack.c.h.b16 %v698
    %v778 = vunpack.c.l.b16 %v699
    %v779 = vunpack.c.h.b16 %v699
    %v780 = vunpack.c.l.b16 %v700
    %v781 = vunpack.c.h.b16 %v700
    %v782 = vunpack.c.l.b16 %v701
    %v783 = vunpack.c.h.b16 %v701
    %v784 = vunpack.c.l.b16 %v702
    %v785 = vunpack.c.h.b16 %v702
    %v786 = vunpack.c.l.b16 %v703
    %v787 = vunpack.c.h.b16 %v703
    %v788 = vunpack.c.l.b16 %v704
    %v789 = vunpack.c.h.b16 %v704
    %v790 = vunpack.c.l.b16 %v705
    %v791 = vunpack.c.h.b16 %v705
    %v792 = vunpack.c.l.b16 %v706
    %v793 = vunpack.c.h.b16 %v706
    %v794 = vunpack.c.l.b16 %v707
    %v795 = vunpack.c.h.b16 %v707
    %v796 = vunpack.c.l.b16 %v708
    %v797 = vunpack.c.h.b16 %v708
    %v798 = vunpack.c.l.b16 %v709
    %v799 = vunpack.c.h.b16 %v709
    %v800 = vunpack.c.l.b16 %v710
    %v801 = vunpack.c.h.b16 %v710
    %v802 = vunpack.c.l.b16 %v711
    %v803 = vunpack.c.h.b16 %v711
    %v804 = vunpack.c.l.b16 %v712
    %v805 = vunpack.c.h.b16 %v712
    %v806 = vunpack.c.l.b16 %v713
    %v807 = vunpack.c.h.b16 %v713
    %v808 = vunpack.c.l.b16 %v714
    %v809 = vunpack.c.h.b16 %v714
    %v810 = vunpack.c.l.b16 %v715
    %v811 = vunpack.c.h.b16 %v715
    %v812 = vunpack.c.l.b16 %v716
    %v813 = vunpack.c.h.b16 %v716
    %v814 = vunpack.c.l.b16 %v717
    %v815 = vunpack.c.h.b16 %v717
    %v816 = vunpack.c.l.b16 %v718
    %v817 = vunpack.c.h.b16 %v718
    %v818 = vunpack.c.l.b16 %v719
    %v819 = vunpack.c.h.b16 %v719
    %v820 = vunpack.c.l.b16 %v720
    %v821 = vunpack.c.h.b16 %v720
    %v822 = vunpack.c.l.b16 %v721
    %v823 = vunpack.c.h.b16 %v721
    %v824 = vunpack.c.l.b16 %v722
    %v825 = vunpack.c.h.b16 %v722
    %v826 = vunpack.c.l.b16 %v723
    %v827 = vunpack.c.h.b16 %v723
    %v828 = vunpack.c.l.b16 %v724
    %v829 = vunpack.c.h.b16 %v724
    %v830 = vunpack.c.l.b16 %v725
    %v831 = vunpack.c.h.b16 %v725
    %v832 = vunpack.c.l.b16 %v726
    %v833 = vunpack.c.h.b16 %v726
    %v834 = vunpack.c.l.b16 %v727
    %v835 = vunpack.c.h.b16 %v727
    %v836 = vpack.c.b16 %v774, %v772
    %v837 = vpack.c.b16 %v775, %v773
    %v838 = vpack.c.b16 %v778, %v776
    %v839 = vpack.c.b16 %v779, %v777
    %v840 = vpack.c.b16 %v782, %v780
    %v841 = vpack.c.b16 %v783, %v781
    %v842 = vpack.c.b16 %v786, %v784
    %v843 = vpack.c.b16 %v787, %v785
    %v844 = vpack.c.b16 %v790, %v788
    %v845 = vpack.c.b16 %v791, %v789
    %v846 = vpack.c.b16 %v794, %v792
    %v847 = vpack.c.b16 %v795, %v793
    %v848 = vpack.c.b16 %v798, %v796
    %v849 = vpack.c.b16 %v799, %v797
    %v850 = vpack.c.b16 %v802, %v800
    %v851 = vpack.c.b16 %v803, %v801
    %v852 = vpack.c.b16 %v806, %v804
    %v853 = vpack.c.b16 %v807, %v805
    %v854 = vpack.c.b16 %v810, %v808
    %v855 = vpack.c.b16 %v811, %v809
    %v856 = vpack.c.b16 %v814, %v812
    %v857 = vpack.c.b16 %v815, %v813
    %v858 = vpack.c.b16 %v818, %v816
    %v859 = vpack.c.b16 %v819, %v817
    %v860 = vpack.c.b16 %v822, %v820
    %v861 = vpack.c.b16 %v823, %v821
    %v862 = vpack.c.b16 %v826, %v824
    %v863 = vpack.c.b16 %v827, %v825
    %v864 = vpack.c.b16 %v830, %v828
    %v865 = vpack.c.b16 %v831, %v829
    %v866 = vpack.c.b16 %v834, %v832
    %v867 = vpack.c.b16 %v835, %v833
    %900 = vmatprep.subr.bf16.mxu0 %v837
    %901 = vmatpush1.bf16.msra.mxu0 %v836
    %902 = vmatprep.subr.bf16.mxu0 %v839
    %903 = vmatpush1.bf16.msra.mxu0 %v838
    %904 = vmatprep.subr.bf16.mxu0 %v841
    %905 = vmatpush1.bf16.msra.mxu0 %v840
    %906 = vmatprep.subr.bf16.mxu0 %v843
    %907 = vmatpush1.bf16.msra.mxu0 %v842
    %908 = vmatprep.subr.bf16.mxu0 %v845
    %909 = vmatpush1.bf16.msra.mxu0 %v844
    %910 = vmatprep.subr.bf16.mxu0 %v847
    %911 = vmatpush1.bf16.msra.mxu0 %v846
    %912 = vmatprep.subr.bf16.mxu0 %v849
    %913 = vmatpush1.bf16.msra.mxu0 %v848
    %914 = vmatprep.subr.bf16.mxu0 %v851
    %915 = vmatpush1.bf16.msra.mxu0 %v850
    %916 = vmatprep.subr.bf16.mxu0 %v853
    %917 = vmatpush1.bf16.msra.mxu0 %v852
    %918 = vmatprep.subr.bf16.mxu0 %v855
    %919 = vmatpush1.bf16.msra.mxu0 %v854
    %920 = vmatprep.subr.bf16.mxu0 %v857
    %921 = vmatpush1.bf16.msra.mxu0 %v856
    %922 = vmatprep.subr.bf16.mxu0 %v859
    %923 = vmatpush1.bf16.msra.mxu0 %v858
    %924 = vmatprep.subr.bf16.mxu0 %v861
    %925 = vmatpush1.bf16.msra.mxu0 %v860
    %926 = vmatprep.subr.bf16.mxu0 %v863
    %927 = vmatpush1.bf16.msra.mxu0 %v862
    %928 = vmatprep.subr.bf16.mxu0 %v865
    %929 = vmatpush1.bf16.msra.mxu0 %v864
    %930 = vmatprep.subr.bf16.mxu0 %v867
    %931 = vmatpush1.bf16.msra.mxu0 %v866
    %932 = vmatprep.mubr.bf16.mxu0 %v695
    %933 = vmatmul.mubr.bf16.gmra.mrb[0].mxu0 %v694
    %v934 = vpop.f32.mrb[0].mxu0
    %v935 = vadd.f32 %v733, %v934
    %v936 = vpop.f32.mrb[0].mxu0
    %v937 = vadd.f32 %v737, %v936
    %v938 = vpop.f32.mrb[0].mxu0
    %v939 = vpop.f32.mrb[0].mxu0
    %940 = vdwg.mxu0
    %v941 = vmax.f32 %v935, 0.0
    %v942 = vmax.f32 %v937, 0.0
    %v943 = vpack.c.bf16 %v941, %v941
    %v944 = vpack.c.bf16 %v942, %v942
    %v945 = vld [vmem:[#allocation10] sm:$0xf]
    %v946 = vld [vmem:[#allocation10 + $0x4] sm:$0xf]
    %v947 = vld [vmem:[#allocation10 + $0x8] sm:$0xf]
    %v948 = vld [vmem:[#allocation10 + $0xc] sm:$0xf]
    %v949 = vld [vmem:[#allocation10 + $0x10] sm:$0xf]
    %v950 = vld [vmem:[#allocation10 + $0x14] sm:$0xf]
    %v951 = vld [vmem:[#allocation10 + $0x18] sm:$0xf]
    %v952 = vld [vmem:[#allocation10 + $0x1c] sm:$0xf]
    %v953 = vld [vmem:[#allocation10 + $0x20] sm:$0xf]
    %v954 = vld [vmem:[#allocation10 + $0x24] sm:$0xf]
    %v955 = vld [vmem:[#allocation10 + $0x28] sm:$0xf]
    %v956 = vld [vmem:[#allocation10 + $0x2c] sm:$0xf]
    %v957 = vld [vmem:[#allocation10 + $0x30] sm:$0xf]
    %v958 = vld [vmem:[#allocation10 + $0x34] sm:$0xf]
    %v959 = vld [vmem:[#allocation10 + $0x38] sm:$0xf]
    %v960 = vld [vmem:[#allocation10 + $0x3c] sm:$0xf]
    %v961 = vld [vmem:[#allocation10 + $0x40] sm:$0xf]
    %v962 = vld [vmem:[#allocation10 + $0x44] sm:$0xf]
    %v963 = vld [vmem:[#allocation10 + $0x48] sm:$0xf]
    %v964 = vld [vmem:[#allocation10 + $0x4c] sm:$0xf]
    %v965 = vld [vmem:[#allocation10 + $0x50] sm:$0xf]
    %v966 = vld [vmem:[#allocation10 + $0x54] sm:$0xf]
    %v967 = vld [vmem:[#allocation10 + $0x58] sm:$0xf]
    %v968 = vld [vmem:[#allocation10 + $0x5c] sm:$0xf]
    %v969 = vld [vmem:[#allocation10 + $0x60] sm:$0xf]
    %v970 = vld [vmem:[#allocation10 + $0x64] sm:$0xf]
    %v971 = vld [vmem:[#allocation10 + $0x68] sm:$0xf]
    %v972 = vld [vmem:[#allocation10 + $0x6c] sm:$0xf]
    %v973 = vld [vmem:[#allocation10 + $0x70] sm:$0xf]
    %v974 = vld [vmem:[#allocation10 + $0x74] sm:$0xf]
    %v975 = vld [vmem:[#allocation10 + $0x78] sm:$0xf]
    %v976 = vld [vmem:[#allocation10 + $0x7c] sm:$0xf]
    %v977 = vld [vmem:[%s7] sm:$0x1]
    %v979 = vlaneseq
    %v980 = vshrl.u32 %v979, 7
    %v981 = vsub.s32 0, %v980
    %v982 = vrot.slane %v977, %v981
    %v1016 = vunpack.c.l.b16 %v945
    %v1017 = vunpack.c.l.b16 %v946
    %v1018 = vunpack.c.l.b16 %v947
    %v1019 = vunpack.c.l.b16 %v948
    %v1020 = vunpack.c.l.b16 %v949
    %v1021 = vunpack.c.l.b16 %v950
    %v1022 = vunpack.c.l.b16 %v951
    %v1023 = vunpack.c.l.b16 %v952
    %v1024 = vunpack.c.l.b16 %v953
    %v1025 = vunpack.c.l.b16 %v954
    %v1026 = vunpack.c.l.b16 %v955
    %v1027 = vunpack.c.l.b16 %v956
    %v1028 = vunpack.c.l.b16 %v957
    %v1029 = vunpack.c.l.b16 %v958
    %v1030 = vunpack.c.l.b16 %v959
    %v1031 = vunpack.c.l.b16 %v960
    %v1032 = vunpack.c.l.b16 %v961
    %v1033 = vunpack.c.l.b16 %v962
    %v1034 = vunpack.c.l.b16 %v963
    %v1035 = vunpack.c.l.b16 %v964
    %v1036 = vunpack.c.l.b16 %v965
    %v1037 = vunpack.c.l.b16 %v966
    %v1038 = vunpack.c.l.b16 %v967
    %v1039 = vunpack.c.l.b16 %v968
    %v1040 = vunpack.c.l.b16 %v969
    %v1041 = vunpack.c.l.b16 %v970
    %v1042 = vunpack.c.l.b16 %v971
    %v1043 = vunpack.c.l.b16 %v972
    %v1044 = vunpack.c.l.b16 %v973
    %v1045 = vunpack.c.l.b16 %v974
    %v1046 = vunpack.c.l.b16 %v975
    %v1047 = vunpack.c.l.b16 %v976
    %v1048 = vpack.c.b16 %v1017, %v1016
    %v1049 = vpack.c.b16 %v1019, %v1018
    %v1050 = vpack.c.b16 %v1021, %v1020
    %v1051 = vpack.c.b16 %v1023, %v1022
    %v1052 = vpack.c.b16 %v1025, %v1024
    %v1053 = vpack.c.b16 %v1027, %v1026
    %v1054 = vpack.c.b16 %v1029, %v1028
    %v1055 = vpack.c.b16 %v1031, %v1030
    %v1056 = vpack.c.b16 %v1033, %v1032
    %v1057 = vpack.c.b16 %v1035, %v1034
    %v1058 = vpack.c.b16 %v1037, %v1036
    %v1059 = vpack.c.b16 %v1039, %v1038
    %v1060 = vpack.c.b16 %v1041, %v1040
    %v1061 = vpack.c.b16 %v1043, %v1042
    %v1062 = vpack.c.b16 %v1045, %v1044
    %v1063 = vpack.c.b16 %v1047, %v1046
    %1080 = vmatprep.subr.bf16.mxu0 0
    %1081 = vmatpush1.bf16.msra.mxu0 %v1048
    %1082 = vmatprep.subr.bf16.mxu0 0
    %1083 = vmatpush1.bf16.msra.mxu0 %v1049
    %1084 = vmatprep.subr.bf16.mxu0 0
    %1085 = vmatpush1.bf16.msra.mxu0 %v1050
    %1086 = vmatprep.subr.bf16.mxu0 0
    %1087 = vmatpush1.bf16.msra.mxu0 %v1051
    %1088 = vmatprep.subr.bf16.mxu0 0
    %1089 = vmatpush1.bf16.msra.mxu0 %v1052
    %1090 = vmatprep.subr.bf16.mxu0 0
    %1091 = vmatpush1.bf16.msra.mxu0 %v1053
    %1092 = vmatprep.subr.bf16.mxu0 0
    %1093 = vmatpush1.bf16.msra.mxu0 %v1054
    %1094 = vmatprep.subr.bf16.mxu0 0
    %1095 = vmatpush1.bf16.msra.mxu0 %v1055
    %1096 = vmatprep.subr.bf16.mxu0 0
    %1097 = vmatpush1.bf16.msra.mxu0 %v1056
    %1098 = vmatprep.subr.bf16.mxu0 0
    %1099 = vmatpush1.bf16.msra.mxu0 %v1057
    %1100 = vmatprep.subr.bf16.mxu0 0
    %1101 = vmatpush1.bf16.msra.mxu0 %v1058
    %1102 = vmatprep.subr.bf16.mxu0 0
    %1103 = vmatpush1.bf16.msra.mxu0 %v1059
    %1104 = vmatprep.subr.bf16.mxu0 0
    %1105 = vmatpush1.bf16.msra.mxu0 %v1060
    %1106 = vmatprep.subr.bf16.mxu0 0
    %1107 = vmatpush1.bf16.msra.mxu0 %v1061
    %1108 = vmatprep.subr.bf16.mxu0 0
    %1109 = vmatpush1.bf16.msra.mxu0 %v1062
    %1110 = vmatprep.subr.bf16.mxu0 0
    %1111 = vmatpush1.bf16.msra.mxu0 %v1063
    %1112 = vmatprep.mubr.bf16.mxu0 %v944
    %1113 = vmatmul.mubr.bf16.gmra.mrb[0].mxu0 %v943
    %v1114 = vpop.f32.mrb[0].mxu0
    %v1115 = vadd.f32 %v982, %v1114
    %v1116 = vpop.f32.mrb[0].mxu0
    %v1117 = vpop.f32.mrb[0].mxu0
    %v1118 = vpop.f32.mrb[0].mxu0
    %1119 = vdwg.mxu0
    %1120 = vst [vmem:[#allocation12] sm:$0xff] %v1115
    // Predicated region
    $region54: #{tpu_custom_call.1} parent=1 // pred_check
      _
    $region55: #{tpu_custom_call.1} parent=1 // pred_check_branch
      %1122 = sbr.rel (0) target = $region57
    $region56: #{tpu_custom_call.1} parent=1 // pred_region
      %s1124 = ssub.s32 128, 128
      %1125 = vsyncadd [#allocation4], %s1124
      %s1127 = sshll.u32 [#allocation11], 4
      %s1128 = int_to_ptr.vmem [resolvable:$true] %s1127
      %1130 = dma.vmem_to_hbm [thread:$0]  %s1128, 128, %s8, [#allocation4]
    $region57: #{tpu_custom_call.1} parent=1 // pred_fallthru
      _
    // Predicated region
    $region58: #{tpu_custom_call.1} parent=1 // pred_check
      _
    $region59: #{tpu_custom_call.1} parent=1 // pred_check_branch
      %1132 = sbr.rel (0) target = $region61
    $region60: #{tpu_custom_call.1} parent=1 // pred_region
      %s1134 = ssub.s32 128, 128
      %1135 = vsyncadd [#allocation13], %s1134
      %s1137 = sshll.u32 [#allocation12], 4
      %s1138 = int_to_ptr.vmem [resolvable:$true] %s1137
      %1140 = dma.vmem_to_hbm [thread:$0]  %s1138, 128, %s9, [#allocation13]
    $region61: #{tpu_custom_call.1} parent=1 // pred_fallthru
      _
    // Predicated region
    $region62: #{tpu_custom_call.1} parent=1 // pred_check
      _
    $region63: #{tpu_custom_call.1} parent=1 // pred_check_branch
      %1142 = sbr.rel (0) target = $region65
    $region64: #{tpu_custom_call.1} parent=1 // pred_region
      %1143 = dma.done [#allocation4], 128
    $region65: #{tpu_custom_call.1} parent=1 // pred_fallthru
      _
    // Predicated region
    $region66: #{tpu_custom_call.1} parent=1 // pred_check
      _
    $region67: #{tpu_custom_call.1} parent=1 // pred_check_branch
      %1145 = sbr.rel (0) target = $region69
    $region68: #{tpu_custom_call.1} parent=1 // pred_region
      %1146 = dma.done [#allocation13], 128
    $region69: #{tpu_custom_call.1} parent=1 // pred_fallthru
      _
    %1147 = vsyncpa [#allocation3], 1
    %1148 = vsyncpa [#allocation6], 1
    %1149 = vsyncpa [#allocation9], 1
    %1150 = vsyncpa [#allocation4], 1
    %1151 = vsyncpa [#allocation13], 1

</llo_original>
